<compile_context>
chip_gen: v5e
topology: v5e:2x2
jax: 0.10.0
libtpu: 0.0.40
codegen_flags: <defaults>
</compile_context>

<pallas_src>
import functools

import jax
import jax.numpy as jnp
import numpy as np
from jax import lax
from jax.experimental import pallas as pl
from jax.experimental.pallas import tpu as pltpu


def _gru_classifier_kernel(
    x_ref,       # (S*B, H)  embedded inputs, time-major, flattened over (S, B)
    h0_ref,      # (B, H)    initial hidden state
    wi_ref,      # (H, 3H)   fused input weights  [W_ir | W_iz | W_in]^T
    wh_ref,      # (H, 3H)   fused hidden weights [W_hr | W_hz | W_hn]^T
    bi_ref,      # (1, 3H)   b_ih
    bh_ref,      # (1, 3H)   b_hh
    wlin_ref,    # (1, H)    linear head weight (row)
    blin_ref,    # (1, 1)    linear head bias
    out_ref,     # (S*B, 1)  sigmoid outputs (trailing 1 re-added in the wrapper)
    hfin_ref,    # (B, H)    final hidden state
    hall_ref,    # VMEM scratch (S*B, H): all hidden states for the batched head
    *,
    seq_len,
    batch,
):
    H = h0_ref.shape[-1]
    f32 = jnp.float32

    # ---- Phase 1: input-side projections for ALL timesteps (off the serial path). ----
    gi_all = (
        jnp.dot(x_ref[...], wi_ref[...], preferred_element_type=f32) + bi_ref[...]
    )  # (S*B, 3H)

    # ---- Phase 2: serial GRU recurrence; one fused (B,H)x(H,3H) matmul per step. ----
    wh = wh_ref[...]
    bh = bh_ref[...]
    h = h0_ref[...]                                    # (B, H)
    for t in range(seq_len):                           # static trip count -> unrolled
        gi = gi_all[t * batch:(t + 1) * batch]         # (B, 3H) static, sublane-aligned
        gh = jnp.dot(h, wh, preferred_element_type=f32) + bh   # (B, 3H)
        i_r, i_z, i_n = gi[:, :H], gi[:, H:2 * H], gi[:, 2 * H:]
        h_r, h_z, h_n = gh[:, :H], gh[:, H:2 * H], gh[:, 2 * H:]
        # PyTorch GRU cell semantics:
        #   r = sigmoid(i_r + h_r); z = sigmoid(i_z + h_z)
        #   n = tanh(i_n + r * h_n); h' = (1 - z) * n + z * h
        r = jax.nn.sigmoid(i_r + h_r)
        z = jax.nn.sigmoid(i_z + h_z)
        n = jnp.tanh(i_n + r * h_n)
        h = (1.0 - z) * n + z * h
        hall_ref[t * batch:(t + 1) * batch, :] = h
    hfin_ref[...] = h                                  # written exactly once

    # ---- Phase 3: batched classifier head: ReLU -> Linear(H,1) -> Sigmoid, one store. ----
    act = jnp.maximum(hall_ref[...], 0.0)              # (S*B, H)
    logits = jnp.sum(act * wlin_ref[...], axis=-1, keepdims=True) + blin_ref[...]
    out_ref[...] = jax.nn.sigmoid(logits)


def gru_classifier_pallas(embedded, h0, params):
    """embedded: (S, B, H) f32, h0: (1, B, H) f32 -> (out (S,B,1), hidden (1,B,H))."""
    S, B, H = embedded.shape
    w_ih, w_hh = params["gru_w_ih"], params["gru_w_hh"]       # (3H, H) each
    b_ih, b_hh = params["gru_b_ih"], params["gru_b_hh"]       # (3H,) each
    w_lin, b_lin = params["lin_w"], params["lin_b"]           # (1, H), (1,)

    # Weight prep (plain JAX glue): fused, transposed so the kernel computes x @ W.
    wi = w_ih.T                        # (H, 3H), columns ordered [r | z | n]
    wh = w_hh.T                        # (H, 3H)
    bi = b_ih.reshape(1, 3 * H)
    bh = b_hh.reshape(1, 3 * H)
    wlin = w_lin.reshape(1, H)
    blin = b_lin.reshape(1, 1)

    x_flat = embedded.reshape(S * B, H)   # time-major flatten (free in XLA)

    vmem_spec = pl.BlockSpec(memory_space=pltpu.MemorySpace.VMEM)  # whole array resident

    kernel = functools.partial(_gru_classifier_kernel, seq_len=S, batch=B)
    out_flat, h_final = pl.pallas_call(
        kernel,
        out_shape=(
            jax.ShapeDtypeStruct((S * B, 1), jnp.float32),
            jax.ShapeDtypeStruct((B, H), jnp.float32),
        ),
        # No grid: one invocation; every (tiny) operand lives whole in VMEM,
        # single-buffered.  (If H is ever scaled up, re-derive the VMEM budget
        # against v7x's 64 MiB physical / 32 MiB scoped default.)
        in_specs=[vmem_spec] * 8,
        out_specs=(vmem_spec, vmem_spec),
        scratch_shapes=[pltpu.VMEM((S * B, H), jnp.float32)],
    )(x_flat, h0[0], wi, wh, bi, bh, wlin, blin)

    return out_flat.reshape(S, B, 1), h_final[None]


def simple_classifier_forward(tokens, hidden, params):
    """Forward pass of SimpleClassifier.

    tokens: (S, B) int32 token ids, hidden: (1, B, H) f32.
    Returns (output (S, B, 1), hidden (1, B, H)).
    """
    # TODO(synk): embedding gather over the 300000-row table stays in plain JAX
    # (data-dependent gather at this table size is left outside the kernel).
    embedded = params["embedding"][tokens]          # (S, B, H) f32
    return gru_classifier_pallas(embedded, hidden, params)


# ------------------------- pure-JAX reference (for verification) -------------------------
def reference_forward(tokens, hidden, params):
    H = params["embedding"].shape[1]
    emb = params["embedding"][tokens]               # (S, B, H)
    w_ih, w_hh = params["gru_w_ih"], params["gru_w_hh"]
    b_ih, b_hh = params["gru_b_ih"], params["gru_b_hh"]

    def cell(h, x):
        gi = x @ w_ih.T + b_ih
        gh = h @ w_hh.T + b_hh
        i_r, i_z, i_n = gi[:, :H], gi[:, H:2 * H], gi[:, 2 * H:]
        h_r, h_z, h_n = gh[:, :H], gh[:, H:2 * H], gh[:, 2 * H:]
        r = jax.nn.sigmoid(i_r + h_r)
        z = jax.nn.sigmoid(i_z + h_z)
        n = jnp.tanh(i_n + r * h_n)
        h_new = (1.0 - z) * n + z * h
        return h_new, h_new

    h_final, outs = lax.scan(cell, hidden[0], emb)
    act = jnp.maximum(outs, 0.0)
    logits = act @ params["lin_w"].T + params["lin_b"]
    return jax.nn.sigmoid(logits), h_final[None]


def make_params(key, vocab_size, hidden_size):
    ks = jax.random.split(key, 7)
    bound = 1.0 / np.sqrt(hidden_size)
    u = lambda k, shape: jax.random.uniform(k, shape, jnp.float32, -bound, bound)
    return {
        "embedding": jax.random.normal(ks[0], (vocab_size, hidden_size), jnp.float32),
        "gru_w_ih": u(ks[1], (3 * hidden_size, hidden_size)),
        "gru_w_hh": u(ks[2], (3 * hidden_size, hidden_size)),
        "gru_b_ih": u(ks[3], (3 * hidden_size,)),
        "gru_b_hh": u(ks[4], (3 * hidden_size,)),
        "lin_w": u(ks[5], (1, hidden_size)),
        "lin_b": u(ks[6], (1,)),
    }


if __name__ == "__main__":
    SEQ, BATCH, HIDDEN, VOCAB = 8, 8, 32, 300000

    key = jax.random.PRNGKey(0)
    k_params, k_tok = jax.random.split(key)
    params = make_params(k_params, VOCAB, HIDDEN)

    tokens = jax.random.randint(k_tok, (SEQ, BATCH), 0, VOCAB, dtype=jnp.int32)
    hidden0 = jnp.zeros((1, BATCH, HIDDEN), jnp.float32)   # matches initHidden semantics

    out, h_final = jax.jit(simple_classifier_forward)(tokens, hidden0, params)
    out = jax.block_until_ready(out)
    h_final = jax.block_until_ready(h_final)

    ref_out, ref_h = reference_forward(tokens, hidden0, params)
    np.testing.assert_allclose(np.asarray(out), np.asarray(ref_out), rtol=1e-5, atol=1e-5)
    np.testing.assert_allclose(np.asarray(h_final), np.asarray(ref_h), rtol=1e-5, atol=1e-5)

    assert out.shape == (SEQ, BATCH, 1) and h_final.shape == (1, BATCH, HIDDEN)
    print("KERNEL_OK")
</pallas_src>

<mosaic_0001>
module attributes {stable_mosaic.version = 11 : i64} {
  func.func @_gru_classifier_kernel(%arg0: memref<64x32xf32, #tpu.memory_space<vmem>>, %arg1: memref<8x32xf32, #tpu.memory_space<vmem>>, %arg2: memref<32x96xf32, #tpu.memory_space<vmem>>, %arg3: memref<32x96xf32, #tpu.memory_space<vmem>>, %arg4: memref<1x96xf32, #tpu.memory_space<vmem>>, %arg5: memref<1x96xf32, #tpu.memory_space<vmem>>, %arg6: memref<1x32xf32, #tpu.memory_space<vmem>>, %arg7: memref<1x1xf32, #tpu.memory_space<vmem>>, %arg8: memref<64x1xf32, #tpu.memory_space<vmem>>, %arg9: memref<8x32xf32, #tpu.memory_space<vmem>>, %arg10: memref<64x32xf32, #tpu.memory_space<vmem>>) attributes {dimension_semantics = [], scalar_prefetch = 0 : i64, scratch_operands = 1 : i64, tpu.core_type = #tpu.core_type<tc>} {
    %c0 = arith.constant 0 : index
    %c0_0 = arith.constant 0 : index
    %0 = vector.load %arg0[%c0, %c0_0] : memref<64x32xf32, #tpu.memory_space<vmem>>, vector<64x32xf32>
    %c0_1 = arith.constant 0 : index
    %c0_2 = arith.constant 0 : index
    %1 = vector.load %arg2[%c0_1, %c0_2] : memref<32x96xf32, #tpu.memory_space<vmem>>, vector<32x96xf32>
    %cst = arith.constant dense<0.000000e+00> : vector<64x96xf32>
    %2 = tpu.matmul %0, %1, %cst {dimension_numbers = #tpu.dot_dimension_numbers<[1], [0], [0], [1], [0, 0, 1, 1], [], []>} : vector<64x32xf32>, vector<32x96xf32>, vector<64x96xf32> -> vector<64x96xf32>
    %c0_3 = arith.constant 0 : index
    %c0_4 = arith.constant 0 : index
    %3 = vector.load %arg4[%c0_3, %c0_4] : memref<1x96xf32, #tpu.memory_space<vmem>>, vector<1x96xf32>
    %4 = vector.broadcast %3 : vector<1x96xf32> to vector<64x96xf32>
    %5 = arith.addf %2, %4 : vector<64x96xf32>
    %c0_5 = arith.constant 0 : index
    %c0_6 = arith.constant 0 : index
    %6 = vector.load %arg3[%c0_5, %c0_6] : memref<32x96xf32, #tpu.memory_space<vmem>>, vector<32x96xf32>
    %c0_7 = arith.constant 0 : index
    %c0_8 = arith.constant 0 : index
    %7 = vector.load %arg5[%c0_7, %c0_8] : memref<1x96xf32, #tpu.memory_space<vmem>>, vector<1x96xf32>
    %c0_9 = arith.constant 0 : index
    %c0_10 = arith.constant 0 : index
    %8 = vector.load %arg1[%c0_9, %c0_10] : memref<8x32xf32, #tpu.memory_space<vmem>>, vector<8x32xf32>
    %9 = vector.extract_strided_slice %5 {offsets = [0, 0], sizes = [8, 96], strides = [1, 1]} : vector<64x96xf32> to vector<8x96xf32>
    %cst_11 = arith.constant dense<0.000000e+00> : vector<8x96xf32>
    %10 = tpu.matmul %8, %6, %cst_11 {dimension_numbers = #tpu.dot_dimension_numbers<[1], [0], [0], [1], [0, 0, 1, 1], [], []>} : vector<8x32xf32>, vector<32x96xf32>, vector<8x96xf32> -> vector<8x96xf32>
    %11 = vector.broadcast %7 : vector<1x96xf32> to vector<8x96xf32>
    %12 = arith.addf %10, %11 : vector<8x96xf32>
    %13 = vector.extract_strided_slice %9 {offsets = [0, 0], sizes = [8, 32], strides = [1, 1]} : vector<8x96xf32> to vector<8x32xf32>
    %14 = vector.extract_strided_slice %9 {offsets = [0, 32], sizes = [8, 32], strides = [1, 1]} : vector<8x96xf32> to vector<8x32xf32>
    %15 = vector.extract_strided_slice %9 {offsets = [0, 64], sizes = [8, 32], strides = [1, 1]} : vector<8x96xf32> to vector<8x32xf32>
    %16 = vector.extract_strided_slice %12 {offsets = [0, 0], sizes = [8, 32], strides = [1, 1]} : vector<8x96xf32> to vector<8x32xf32>
    %17 = vector.extract_strided_slice %12 {offsets = [0, 32], sizes = [8, 32], strides = [1, 1]} : vector<8x96xf32> to vector<8x32xf32>
    %18 = vector.extract_strided_slice %12 {offsets = [0, 64], sizes = [8, 32], strides = [1, 1]} : vector<8x96xf32> to vector<8x32xf32>
    %19 = arith.addf %13, %16 : vector<8x32xf32>
    %20 = arith.negf %19 : vector<8x32xf32>
    %21 = math.exp %20 : vector<8x32xf32>
    %cst_12 = arith.constant 1.000000e+00 : f32
    %22 = vector.broadcast %cst_12 : f32 to vector<8x32xf32>
    %23 = arith.addf %22, %21 : vector<8x32xf32>
    %24 = arith.divf %22, %23 : vector<8x32xf32>
    %25 = arith.addf %14, %17 : vector<8x32xf32>
    %26 = arith.negf %25 : vector<8x32xf32>
    %27 = math.exp %26 : vector<8x32xf32>
    %cst_13 = arith.constant 1.000000e+00 : f32
    %28 = vector.broadcast %cst_13 : f32 to vector<8x32xf32>
    %29 = arith.addf %28, %27 : vector<8x32xf32>
    %30 = arith.divf %28, %29 : vector<8x32xf32>
    %31 = arith.mulf %24, %18 : vector<8x32xf32>
    %32 = arith.addf %15, %31 : vector<8x32xf32>
    %33 = math.tanh %32 : vector<8x32xf32>
    %cst_14 = arith.constant 1.000000e+00 : f32
    %34 = vector.broadcast %cst_14 : f32 to vector<8x32xf32>
    %35 = arith.subf %34, %30 : vector<8x32xf32>
    %36 = arith.mulf %35, %33 : vector<8x32xf32>
    %37 = arith.mulf %30, %8 : vector<8x32xf32>
    %38 = arith.addf %36, %37 : vector<8x32xf32>
    %c0_15 = arith.constant 0 : index
    %c0_16 = arith.constant 0 : index
    %39 = vector.load %arg10[%c0_15, %c0_16] : memref<64x32xf32, #tpu.memory_space<vmem>>, vector<8x32xf32>
    tpu.vector_store %arg10[%c0_15, %c0_16], %38 {strides = array<i32>} : memref<64x32xf32, #tpu.memory_space<vmem>>, vector<8x32xf32>,
    %40 = vector.extract_strided_slice %5 {offsets = [8, 0], sizes = [8, 96], strides = [1, 1]} : vector<64x96xf32> to vector<8x96xf32>
    %cst_17 = arith.constant dense<0.000000e+00> : vector<8x96xf32>
    %41 = tpu.matmul %38, %6, %cst_17 {dimension_numbers = #tpu.dot_dimension_numbers<[1], [0], [0], [1], [0, 0, 1, 1], [], []>} : vector<8x32xf32>, vector<32x96xf32>, vector<8x96xf32> -> vector<8x96xf32>
    %42 = vector.broadcast %7 : vector<1x96xf32> to vector<8x96xf32>
    %43 = arith.addf %41, %42 : vector<8x96xf32>
    %44 = vector.extract_strided_slice %40 {offsets = [0, 0], sizes = [8, 32], strides = [1, 1]} : vector<8x96xf32> to vector<8x32xf32>
    %45 = vector.extract_strided_slice %40 {offsets = [0, 32], sizes = [8, 32], strides = [1, 1]} : vector<8x96xf32> to vector<8x32xf32>
    %46 = vector.extract_strided_slice %40 {offsets = [0, 64], sizes = [8, 32], strides = [1, 1]} : vector<8x96xf32> to vector<8x32xf32>
    %47 = vector.extract_strided_slice %43 {offsets = [0, 0], sizes = [8, 32], strides = [1, 1]} : vector<8x96xf32> to vector<8x32xf32>
    %48 = vector.extract_strided_slice %43 {offsets = [0, 32], sizes = [8, 32], strides = [1, 1]} : vector<8x96xf32> to vector<8x32xf32>
    %49 = vector.extract_strided_slice %43 {offsets = [0, 64], sizes = [8, 32], strides = [1, 1]} : vector<8x96xf32> to vector<8x32xf32>
    %50 = arith.addf %44, %47 : vector<8x32xf32>
    %51 = arith.negf %50 : vector<8x32xf32>
    %52 = math.exp %51 : vector<8x32xf32>
    %cst_18 = arith.constant 1.000000e+00 : f32
    %53 = vector.broadcast %cst_18 : f32 to vector<8x32xf32>
    %54 = arith.addf %53, %52 : vector<8x32xf32>
    %55 = arith.divf %53, %54 : vector<8x32xf32>
    %56 = arith.addf %45, %48 : vector<8x32xf32>
    %57 = arith.negf %56 : vector<8x32xf32>
    %58 = math.exp %57 : vector<8x32xf32>
    %cst_19 = arith.constant 1.000000e+00 : f32
    %59 = vector.broadcast %cst_19 : f32 to vector<8x32xf32>
    %60 = arith.addf %59, %58 : vector<8x32xf32>
    %61 = arith.divf %59, %60 : vector<8x32xf32>
    %62 = arith.mulf %55, %49 : vector<8x32xf32>
    %63 = arith.addf %46, %62 : vector<8x32xf32>
    %64 = math.tanh %63 : vector<8x32xf32>
    %cst_20 = arith.constant 1.000000e+00 : f32
    %65 = vector.broadcast %cst_20 : f32 to vector<8x32xf32>
    %66 = arith.subf %65, %61 : vector<8x32xf32>
    %67 = arith.mulf %66, %64 : vector<8x32xf32>
    %68 = arith.mulf %61, %38 : vector<8x32xf32>
    %69 = arith.addf %67, %68 : vector<8x32xf32>
    %c8 = arith.constant 8 : index
    %c0_21 = arith.constant 0 : index
    %70 = vector.load %arg10[%c8, %c0_21] : memref<64x32xf32, #tpu.memory_space<vmem>>, vector<8x32xf32>
    tpu.vector_store %arg10[%c8, %c0_21], %69 {strides = array<i32>} : memref<64x32xf32, #tpu.memory_space<vmem>>, vector<8x32xf32>,
    %71 = vector.extract_strided_slice %5 {offsets = [16, 0], sizes = [8, 96], strides = [1, 1]} : vector<64x96xf32> to vector<8x96xf32>
    %cst_22 = arith.constant dense<0.000000e+00> : vector<8x96xf32>
    %72 = tpu.matmul %69, %6, %cst_22 {dimension_numbers = #tpu.dot_dimension_numbers<[1], [0], [0], [1], [0, 0, 1, 1], [], []>} : vector<8x32xf32>, vector<32x96xf32>, vector<8x96xf32> -> vector<8x96xf32>
    %73 = vector.broadcast %7 : vector<1x96xf32> to vector<8x96xf32>
    %74 = arith.addf %72, %73 : vector<8x96xf32>
    %75 = vector.extract_strided_slice %71 {offsets = [0, 0], sizes = [8, 32], strides = [1, 1]} : vector<8x96xf32> to vector<8x32xf32>
    %76 = vector.extract_strided_slice %71 {offsets = [0, 32], sizes = [8, 32], strides = [1, 1]} : vector<8x96xf32> to vector<8x32xf32>
    %77 = vector.extract_strided_slice %71 {offsets = [0, 64], sizes = [8, 32], strides = [1, 1]} : vector<8x96xf32> to vector<8x32xf32>
    %78 = vector.extract_strided_slice %74 {offsets = [0, 0], sizes = [8, 32], strides = [1, 1]} : vector<8x96xf32> to vector<8x32xf32>
    %79 = vector.extract_strided_slice %74 {offsets = [0, 32], sizes = [8, 32], strides = [1, 1]} : vector<8x96xf32> to vector<8x32xf32>
    %80 = vector.extract_strided_slice %74 {offsets = [0, 64], sizes = [8, 32], strides = [1, 1]} : vector<8x96xf32> to vector<8x32xf32>
    %81 = arith.addf %75, %78 : vector<8x32xf32>
    %82 = arith.negf %81 : vector<8x32xf32>
    %83 = math.exp %82 : vector<8x32xf32>
    %cst_23 = arith.constant 1.000000e+00 : f32
    %84 = vector.broadcast %cst_23 : f32 to vector<8x32xf32>
    %85 = arith.addf %84, %83 : vector<8x32xf32>
    %86 = arith.divf %84, %85 : vector<8x32xf32>
    %87 = arith.addf %76, %79 : vector<8x32xf32>
    %88 = arith.negf %87 : vector<8x32xf32>
    %89 = math.exp %88 : vector<8x32xf32>
    %cst_24 = arith.constant 1.000000e+00 : f32
    %90 = vector.broadcast %cst_24 : f32 to vector<8x32xf32>
    %91 = arith.addf %90, %89 : vector<8x32xf32>
    %92 = arith.divf %90, %91 : vector<8x32xf32>
    %93 = arith.mulf %86, %80 : vector<8x32xf32>
    %94 = arith.addf %77, %93 : vector<8x32xf32>
    %95 = math.tanh %94 : vector<8x32xf32>
    %cst_25 = arith.constant 1.000000e+00 : f32
    %96 = vector.broadcast %cst_25 : f32 to vector<8x32xf32>
    %97 = arith.subf %96, %92 : vector<8x32xf32>
    %98 = arith.mulf %97, %95 : vector<8x32xf32>
    %99 = arith.mulf %92, %69 : vector<8x32xf32>
    %100 = arith.addf %98, %99 : vector<8x32xf32>
    %c16 = arith.constant 16 : index
    %c0_26 = arith.constant 0 : index
    %101 = vector.load %arg10[%c16, %c0_26] : memref<64x32xf32, #tpu.memory_space<vmem>>, vector<8x32xf32>
    tpu.vector_store %arg10[%c16, %c0_26], %100 {strides = array<i32>} : memref<64x32xf32, #tpu.memory_space<vmem>>, vector<8x32xf32>,
    %102 = vector.extract_strided_slice %5 {offsets = [24, 0], sizes = [8, 96], strides = [1, 1]} : vector<64x96xf32> to vector<8x96xf32>
    %cst_27 = arith.constant dense<0.000000e+00> : vector<8x96xf32>
    %103 = tpu.matmul %100, %6, %cst_27 {dimension_numbers = #tpu.dot_dimension_numbers<[1], [0], [0], [1], [0, 0, 1, 1], [], []>} : vector<8x32xf32>, vector<32x96xf32>, vector<8x96xf32> -> vector<8x96xf32>
    %104 = vector.broadcast %7 : vector<1x96xf32> to vector<8x96xf32>
    %105 = arith.addf %103, %104 : vector<8x96xf32>
    %106 = vector.extract_strided_slice %102 {offsets = [0, 0], sizes = [8, 32], strides = [1, 1]} : vector<8x96xf32> to vector<8x32xf32>
    %107 = vector.extract_strided_slice %102 {offsets = [0, 32], sizes = [8, 32], strides = [1, 1]} : vector<8x96xf32> to vector<8x32xf32>
    %108 = vector.extract_strided_slice %102 {offsets = [0, 64], sizes = [8, 32], strides = [1, 1]} : vector<8x96xf32> to vector<8x32xf32>
    %109 = vector.extract_strided_slice %105 {offsets = [0, 0], sizes = [8, 32], strides = [1, 1]} : vector<8x96xf32> to vector<8x32xf32>
    %110 = vector.extract_strided_slice %105 {offsets = [0, 32], sizes = [8, 32], strides = [1, 1]} : vector<8x96xf32> to vector<8x32xf32>
    %111 = vector.extract_strided_slice %105 {offsets = [0, 64], sizes = [8, 32], strides = [1, 1]} : vector<8x96xf32> to vector<8x32xf32>
    %112 = arith.addf %106, %109 : vector<8x32xf32>
    %113 = arith.negf %112 : vector<8x32xf32>
    %114 = math.exp %113 : vector<8x32xf32>
    %cst_28 = arith.constant 1.000000e+00 : f32
    %115 = vector.broadcast %cst_28 : f32 to vector<8x32xf32>
    %116 = arith.addf %115, %114 : vector<8x32xf32>
    %117 = arith.divf %115, %116 : vector<8x32xf32>
    %118 = arith.addf %107, %110 : vector<8x32xf32>
    %119 = arith.negf %118 : vector<8x32xf32>
    %120 = math.exp %119 : vector<8x32xf32>
    %cst_29 = arith.constant 1.000000e+00 : f32
    %121 = vector.broadcast %cst_29 : f32 to vector<8x32xf32>
    %122 = arith.addf %121, %120 : vector<8x32xf32>
    %123 = arith.divf %121, %122 : vector<8x32xf32>
    %124 = arith.mulf %117, %111 : vector<8x32xf32>
    %125 = arith.addf %108, %124 : vector<8x32xf32>
    %126 = math.tanh %125 : vector<8x32xf32>
    %cst_30 = arith.constant 1.000000e+00 : f32
    %127 = vector.broadcast %cst_30 : f32 to vector<8x32xf32>
    %128 = arith.subf %127, %123 : vector<8x32xf32>
    %129 = arith.mulf %128, %126 : vector<8x32xf32>
    %130 = arith.mulf %123, %100 : vector<8x32xf32>
    %131 = arith.addf %129, %130 : vector<8x32xf32>
    %c24 = arith.constant 24 : index
    %c0_31 = arith.constant 0 : index
    %132 = vector.load %arg10[%c24, %c0_31] : memref<64x32xf32, #tpu.memory_space<vmem>>, vector<8x32xf32>
    tpu.vector_store %arg10[%c24, %c0_31], %131 {strides = array<i32>} : memref<64x32xf32, #tpu.memory_space<vmem>>, vector<8x32xf32>,
    %133 = vector.extract_strided_slice %5 {offsets = [32, 0], sizes = [8, 96], strides = [1, 1]} : vector<64x96xf32> to vector<8x96xf32>
    %cst_32 = arith.constant dense<0.000000e+00> : vector<8x96xf32>
    %134 = tpu.matmul %131, %6, %cst_32 {dimension_numbers = #tpu.dot_dimension_numbers<[1], [0], [0], [1], [0, 0, 1, 1], [], []>} : vector<8x32xf32>, vector<32x96xf32>, vector<8x96xf32> -> vector<8x96xf32>
    %135 = vector.broadcast %7 : vector<1x96xf32> to vector<8x96xf32>
    %136 = arith.addf %134, %135 : vector<8x96xf32>
    %137 = vector.extract_strided_slice %133 {offsets = [0, 0], sizes = [8, 32], strides = [1, 1]} : vector<8x96xf32> to vector<8x32xf32>
    %138 = vector.extract_strided_slice %133 {offsets = [0, 32], sizes = [8, 32], strides = [1, 1]} : vector<8x96xf32> to vector<8x32xf32>
    %139 = vector.extract_strided_slice %133 {offsets = [0, 64], sizes = [8, 32], strides = [1, 1]} : vector<8x96xf32> to vector<8x32xf32>
    %140 = vector.extract_strided_slice %136 {offsets = [0, 0], sizes = [8, 32], strides = [1, 1]} : vector<8x96xf32> to vector<8x32xf32>
    %141 = vector.extract_strided_slice %136 {offsets = [0, 32], sizes = [8, 32], strides = [1, 1]} : vector<8x96xf32> to vector<8x32xf32>
    %142 = vector.extract_strided_slice %136 {offsets = [0, 64], sizes = [8, 32], strides = [1, 1]} : vector<8x96xf32> to vector<8x32xf32>
    %143 = arith.addf %137, %140 : vector<8x32xf32>
    %144 = arith.negf %143 : vector<8x32xf32>
    %145 = math.exp %144 : vector<8x32xf32>
    %cst_33 = arith.constant 1.000000e+00 : f32
    %146 = vector.broadcast %cst_33 : f32 to vector<8x32xf32>
    %147 = arith.addf %146, %145 : vector<8x32xf32>
    %148 = arith.divf %146, %147 : vector<8x32xf32>
    %149 = arith.addf %138, %141 : vector<8x32xf32>
    %150 = arith.negf %149 : vector<8x32xf32>
    %151 = math.exp %150 : vector<8x32xf32>
    %cst_34 = arith.constant 1.000000e+00 : f32
    %152 = vector.broadcast %cst_34 : f32 to vector<8x32xf32>
    %153 = arith.addf %152, %151 : vector<8x32xf32>
    %154 = arith.divf %152, %153 : vector<8x32xf32>
    %155 = arith.mulf %148, %142 : vector<8x32xf32>
    %156 = arith.addf %139, %155 : vector<8x32xf32>
    %157 = math.tanh %156 : vector<8x32xf32>
    %cst_35 = arith.constant 1.000000e+00 : f32
    %158 = vector.broadcast %cst_35 : f32 to vector<8x32xf32>
    %159 = arith.subf %158, %154 : vector<8x32xf32>
    %160 = arith.mulf %159, %157 : vector<8x32xf32>
    %161 = arith.mulf %154, %131 : vector<8x32xf32>
    %162 = arith.addf %160, %161 : vector<8x32xf32>
    %c32 = arith.constant 32 : index
    %c0_36 = arith.constant 0 : index
    %163 = vector.load %arg10[%c32, %c0_36] : memref<64x32xf32, #tpu.memory_space<vmem>>, vector<8x32xf32>
    tpu.vector_store %arg10[%c32, %c0_36], %162 {strides = array<i32>} : memref<64x32xf32, #tpu.memory_space<vmem>>, vector<8x32xf32>,
    %164 = vector.extract_strided_slice %5 {offsets = [40, 0], sizes = [8, 96], strides = [1, 1]} : vector<64x96xf32> to vector<8x96xf32>
    %cst_37 = arith.constant dense<0.000000e+00> : vector<8x96xf32>
    %165 = tpu.matmul %162, %6, %cst_37 {dimension_numbers = #tpu.dot_dimension_numbers<[1], [0], [0], [1], [0, 0, 1, 1], [], []>} : vector<8x32xf32>, vector<32x96xf32>, vector<8x96xf32> -> vector<8x96xf32>
    %166 = vector.broadcast %7 : vector<1x96xf32> to vector<8x96xf32>
    %167 = arith.addf %165, %166 : vector<8x96xf32>
    %168 = vector.extract_strided_slice %164 {offsets = [0, 0], sizes = [8, 32], strides = [1, 1]} : vector<8x96xf32> to vector<8x32xf32>
    %169 = vector.extract_strided_slice %164 {offsets = [0, 32], sizes = [8, 32], strides = [1, 1]} : vector<8x96xf32> to vector<8x32xf32>
    %170 = vector.extract_strided_slice %164 {offsets = [0, 64], sizes = [8, 32], strides = [1, 1]} : vector<8x96xf32> to vector<8x32xf32>
    %171 = vector.extract_strided_slice %167 {offsets = [0, 0], sizes = [8, 32], strides = [1, 1]} : vector<8x96xf32> to vector<8x32xf32>
    %172 = vector.extract_strided_slice %167 {offsets = [0, 32], sizes = [8, 32], strides = [1, 1]} : vector<8x96xf32> to vector<8x32xf32>
    %173 = vector.extract_strided_slice %167 {offsets = [0, 64], sizes = [8, 32], strides = [1, 1]} : vector<8x96xf32> to vector<8x32xf32>
    %174 = arith.addf %168, %171 : vector<8x32xf32>
    %175 = arith.negf %174 : vector<8x32xf32>
    %176 = math.exp %175 : vector<8x32xf32>
    %cst_38 = arith.constant 1.000000e+00 : f32
    %177 = vector.broadcast %cst_38 : f32 to vector<8x32xf32>
    %178 = arith.addf %177, %176 : vector<8x32xf32>
    %179 = arith.divf %177, %178 : vector<8x32xf32>
    %180 = arith.addf %169, %172 : vector<8x32xf32>
    %181 = arith.negf %180 : vector<8x32xf32>
    %182 = math.exp %181 : vector<8x32xf32>
    %cst_39 = arith.constant 1.000000e+00 : f32
    %183 = vector.broadcast %cst_39 : f32 to vector<8x32xf32>
    %184 = arith.addf %183, %182 : vector<8x32xf32>
    %185 = arith.divf %183, %184 : vector<8x32xf32>
    %186 = arith.mulf %179, %173 : vector<8x32xf32>
    %187 = arith.addf %170, %186 : vector<8x32xf32>
    %188 = math.tanh %187 : vector<8x32xf32>
    %cst_40 = arith.constant 1.000000e+00 : f32
    %189 = vector.broadcast %cst_40 : f32 to vector<8x32xf32>
    %190 = arith.subf %189, %185 : vector<8x32xf32>
    %191 = arith.mulf %190, %188 : vector<8x32xf32>
    %192 = arith.mulf %185, %162 : vector<8x32xf32>
    %193 = arith.addf %191, %192 : vector<8x32xf32>
    %c40 = arith.constant 40 : index
    %c0_41 = arith.constant 0 : index
    %194 = vector.load %arg10[%c40, %c0_41] : memref<64x32xf32, #tpu.memory_space<vmem>>, vector<8x32xf32>
    tpu.vector_store %arg10[%c40, %c0_41], %193 {strides = array<i32>} : memref<64x32xf32, #tpu.memory_space<vmem>>, vector<8x32xf32>,
    %195 = vector.extract_strided_slice %5 {offsets = [48, 0], sizes = [8, 96], strides = [1, 1]} : vector<64x96xf32> to vector<8x96xf32>
    %cst_42 = arith.constant dense<0.000000e+00> : vector<8x96xf32>
    %196 = tpu.matmul %193, %6, %cst_42 {dimension_numbers = #tpu.dot_dimension_numbers<[1], [0], [0], [1], [0, 0, 1, 1], [], []>} : vector<8x32xf32>, vector<32x96xf32>, vector<8x96xf32> -> vector<8x96xf32>
    %197 = vector.broadcast %7 : vector<1x96xf32> to vector<8x96xf32>
    %198 = arith.addf %196, %197 : vector<8x96xf32>
    %199 = vector.extract_strided_slice %195 {offsets = [0, 0], sizes = [8, 32], strides = [1, 1]} : vector<8x96xf32> to vector<8x32xf32>
    %200 = vector.extract_strided_slice %195 {offsets = [0, 32], sizes = [8, 32], strides = [1, 1]} : vector<8x96xf32> to vector<8x32xf32>
    %201 = vector.extract_strided_slice %195 {offsets = [0, 64], sizes = [8, 32], strides = [1, 1]} : vector<8x96xf32> to vector<8x32xf32>
    %202 = vector.extract_strided_slice %198 {offsets = [0, 0], sizes = [8, 32], strides = [1, 1]} : vector<8x96xf32> to vector<8x32xf32>
    %203 = vector.extract_strided_slice %198 {offsets = [0, 32], sizes = [8, 32], strides = [1, 1]} : vector<8x96xf32> to vector<8x32xf32>
    %204 = vector.extract_strided_slice %198 {offsets = [0, 64], sizes = [8, 32], strides = [1, 1]} : vector<8x96xf32> to vector<8x32xf32>
    %205 = arith.addf %199, %202 : vector<8x32xf32>
    %206 = arith.negf %205 : vector<8x32xf32>
    %207 = math.exp %206 : vector<8x32xf32>
    %cst_43 = arith.constant 1.000000e+00 : f32
    %208 = vector.broadcast %cst_43 : f32 to vector<8x32xf32>
    %209 = arith.addf %208, %207 : vector<8x32xf32>
    %210 = arith.divf %208, %209 : vector<8x32xf32>
    %211 = arith.addf %200, %203 : vector<8x32xf32>
    %212 = arith.negf %211 : vector<8x32xf32>
    %213 = math.exp %212 : vector<8x32xf32>
    %cst_44 = arith.constant 1.000000e+00 : f32
    %214 = vector.broadcast %cst_44 : f32 to vector<8x32xf32>
    %215 = arith.addf %214, %213 : vector<8x32xf32>
    %216 = arith.divf %214, %215 : vector<8x32xf32>
    %217 = arith.mulf %210, %204 : vector<8x32xf32>
    %218 = arith.addf %201, %217 : vector<8x32xf32>
    %219 = math.tanh %218 : vector<8x32xf32>
    %cst_45 = arith.constant 1.000000e+00 : f32
    %220 = vector.broadcast %cst_45 : f32 to vector<8x32xf32>
    %221 = arith.subf %220, %216 : vector<8x32xf32>
    %222 = arith.mulf %221, %219 : vector<8x32xf32>
    %223 = arith.mulf %216, %193 : vector<8x32xf32>
    %224 = arith.addf %222, %223 : vector<8x32xf32>
    %c48 = arith.constant 48 : index
    %c0_46 = arith.constant 0 : index
    %225 = vector.load %arg10[%c48, %c0_46] : memref<64x32xf32, #tpu.memory_space<vmem>>, vector<8x32xf32>
    tpu.vector_store %arg10[%c48, %c0_46], %224 {strides = array<i32>} : memref<64x32xf32, #tpu.memory_space<vmem>>, vector<8x32xf32>,
    %226 = vector.extract_strided_slice %5 {offsets = [56, 0], sizes = [8, 96], strides = [1, 1]} : vector<64x96xf32> to vector<8x96xf32>
    %cst_47 = arith.constant dense<0.000000e+00> : vector<8x96xf32>
    %227 = tpu.matmul %224, %6, %cst_47 {dimension_numbers = #tpu.dot_dimension_numbers<[1], [0], [0], [1], [0, 0, 1, 1], [], []>} : vector<8x32xf32>, vector<32x96xf32>, vector<8x96xf32> -> vector<8x96xf32>
    %228 = vector.broadcast %7 : vector<1x96xf32> to vector<8x96xf32>
    %229 = arith.addf %227, %228 : vector<8x96xf32>
    %230 = vector.extract_strided_slice %226 {offsets = [0, 0], sizes = [8, 32], strides = [1, 1]} : vector<8x96xf32> to vector<8x32xf32>
    %231 = vector.extract_strided_slice %226 {offsets = [0, 32], sizes = [8, 32], strides = [1, 1]} : vector<8x96xf32> to vector<8x32xf32>
    %232 = vector.extract_strided_slice %226 {offsets = [0, 64], sizes = [8, 32], strides = [1, 1]} : vector<8x96xf32> to vector<8x32xf32>
    %233 = vector.extract_strided_slice %229 {offsets = [0, 0], sizes = [8, 32], strides = [1, 1]} : vector<8x96xf32> to vector<8x32xf32>
    %234 = vector.extract_strided_slice %229 {offsets = [0, 32], sizes = [8, 32], strides = [1, 1]} : vector<8x96xf32> to vector<8x32xf32>
    %235 = vector.extract_strided_slice %229 {offsets = [0, 64], sizes = [8, 32], strides = [1, 1]} : vector<8x96xf32> to vector<8x32xf32>
    %236 = arith.addf %230, %233 : vector<8x32xf32>
    %237 = arith.negf %236 : vector<8x32xf32>
    %238 = math.exp %237 : vector<8x32xf32>
    %cst_48 = arith.constant 1.000000e+00 : f32
    %239 = vector.broadcast %cst_48 : f32 to vector<8x32xf32>
    %240 = arith.addf %239, %238 : vector<8x32xf32>
    %241 = arith.divf %239, %240 : vector<8x32xf32>
    %242 = arith.addf %231, %234 : vector<8x32xf32>
    %243 = arith.negf %242 : vector<8x32xf32>
    %244 = math.exp %243 : vector<8x32xf32>
    %cst_49 = arith.constant 1.000000e+00 : f32
    %245 = vector.broadcast %cst_49 : f32 to vector<8x32xf32>
    %246 = arith.addf %245, %244 : vector<8x32xf32>
    %247 = arith.divf %245, %246 : vector<8x32xf32>
    %248 = arith.mulf %241, %235 : vector<8x32xf32>
    %249 = arith.addf %232, %248 : vector<8x32xf32>
    %250 = math.tanh %249 : vector<8x32xf32>
    %cst_50 = arith.constant 1.000000e+00 : f32
    %251 = vector.broadcast %cst_50 : f32 to vector<8x32xf32>
    %252 = arith.subf %251, %247 : vector<8x32xf32>
    %253 = arith.mulf %252, %250 : vector<8x32xf32>
    %254 = arith.mulf %247, %224 : vector<8x32xf32>
    %255 = arith.addf %253, %254 : vector<8x32xf32>
    %c56 = arith.constant 56 : index
    %c0_51 = arith.constant 0 : index
    %256 = vector.load %arg10[%c56, %c0_51] : memref<64x32xf32, #tpu.memory_space<vmem>>, vector<8x32xf32>
    tpu.vector_store %arg10[%c56, %c0_51], %255 {strides = array<i32>} : memref<64x32xf32, #tpu.memory_space<vmem>>, vector<8x32xf32>,
    %c0_52 = arith.constant 0 : index
    %c0_53 = arith.constant 0 : index
    %257 = vector.load %arg9[%c0_52, %c0_53] : memref<8x32xf32, #tpu.memory_space<vmem>>, vector<8x32xf32>
    tpu.vector_store %arg9[%c0_52, %c0_53], %255 {strides = array<i32>} : memref<8x32xf32, #tpu.memory_space<vmem>>, vector<8x32xf32>,
    %c0_54 = arith.constant 0 : index
    %c0_55 = arith.constant 0 : index
    %258 = vector.load %arg10[%c0_54, %c0_55] : memref<64x32xf32, #tpu.memory_space<vmem>>, vector<64x32xf32>
    %cst_56 = arith.constant 0.000000e+00 : f32
    %259 = vector.broadcast %cst_56 : f32 to vector<64x32xf32>
    %260 = arith.maximumf %258, %259 : vector<64x32xf32>
    %c0_57 = arith.constant 0 : index
    %c0_58 = arith.constant 0 : index
    %261 = vector.load %arg6[%c0_57, %c0_58] : memref<1x32xf32, #tpu.memory_space<vmem>>, vector<1x32xf32>
    %262 = vector.broadcast %261 : vector<1x32xf32> to vector<64x32xf32>
    %263 = arith.mulf %260, %262 : vector<64x32xf32>
    %cst_59 = arith.constant dense<0.000000e+00> : vector<64xf32>
    %264 = vector.multi_reduction <add>, %263, %cst_59 [1] : vector<64x32xf32> to vector<64xf32>
    %265 = vector.shape_cast %264 : vector<64xf32> to vector<64x1xf32>
    %c0_60 = arith.constant 0 : index
    %c0_61 = arith.constant 0 : index
    %266 = vector.load %arg7[%c0_60, %c0_61] : memref<1x1xf32, #tpu.memory_space<vmem>>, vector<1x1xf32>
    %267 = vector.broadcast %266 : vector<1x1xf32> to vector<64x1xf32>
    %268 = arith.addf %265, %267 : vector<64x1xf32>
    %269 = arith.negf %268 : vector<64x1xf32>
    %270 = math.exp %269 : vector<64x1xf32>
    %cst_62 = arith.constant 1.000000e+00 : f32
    %271 = vector.broadcast %cst_62 : f32 to vector<64x1xf32>
    %272 = arith.addf %271, %270 : vector<64x1xf32>
    %273 = arith.divf %271, %272 : vector<64x1xf32>
    %c0_63 = arith.constant 0 : index
    %c0_64 = arith.constant 0 : index
    %274 = vector.load %arg8[%c0_63, %c0_64] : memref<64x1xf32, #tpu.memory_space<vmem>>, vector<64x1xf32>
    tpu.vector_store %arg8[%c0_63, %c0_64], %273 {strides = array<i32>} : memref<64x1xf32, #tpu.memory_space<vmem>>, vector<64x1xf32>,
    return
  }
}

</mosaic_0001>

<llo_original>
// kernel: simple_classifier_forward.1
$region0: #{simple_classifier_forward.1}
  #allocation0 [shape = 'u32[]', space=smem, size = 0x4, offset = 0x4, fixed_abs, tag = 'smem constant byte address 0x4 - core index']
  #allocation1 [shape = 'u32[72,128]{1,0:T(1,128)}', space=vmem, size = 0x9000, scoped, tag = 'internal scratch']
  #allocation2 [shape = 'f32[64,32]{1,0:T(8,128)}', space=vmem, size = 0x8000, scoped, tag = 'scratch operand']
  #allocation3 [shape = 'f32[1,1]{1,0:T(1,128)S(1)}', space=vmem, size = 0x200, scoped, tag = 'scoped memory for simple_classifier_forward.1']
  %s0 = inlined_call_operand.vmem [shape: f32[64,32], index: 0, kind: input, shape index: {}]
  %s1 = inlined_call_operand.vmem [shape: f32[8,32], index: 1, kind: input, shape index: {}]
  %s2 = inlined_call_operand.vmem [shape: f32[32,96], index: 2, kind: input, shape index: {}]
  %s3 = inlined_call_operand.vmem [shape: f32[32,96], index: 3, kind: input, shape index: {}]
  %s4 = inlined_call_operand.vmem [shape: f32[1,96], index: 4, kind: input, shape index: {}]
  %s5 = inlined_call_operand.vmem [shape: f32[1,96], index: 5, kind: input, shape index: {}]
  %s6 = inlined_call_operand.vmem [shape: f32[1,32], index: 6, kind: input, shape index: {}]
  %s7 = inlined_call_operand.<no memory space> [shape: f32[1,1], index: 7, kind: input, shape index: {}]
  %s8 = inlined_call_operand.vmem [shape: f32[64,1], index: 8, kind: output, shape index: {0}]
  %s9 = inlined_call_operand.hbm [shape: f32[8,32], index: 9, kind: output, shape index: {1}]
  %10 = xla_tuple %s8, %s9
  %s11 = sld [smem:[#allocation0]]
  $region50: #{simple_classifier_forward.1} parent=0
    _
  %s13 = ssub.s32 1, %s11
  %s14 = scalar_select 0, %s13, %s11
  %v15 = vstv %s7
  %16 = vst [vmem:[#allocation3] sm:$0x1] %v15
  $region1: #{simple_classifier_forward.1} parent=0
    #allocation4 [shape = 'u8[4096]{0}', space=vmem, size = 0x1000, scoped, tag = 'output window, operand 1, single buffered']
    #allocation5 [shape = 's32[1]{0}', space=sflag, size = 0x4, scoped, tag = 'scoped memory for simple_classifier_forward.1']
    %17 = vsyncpa [#allocation5], 0
    // Predicated region
    $region2: #{simple_classifier_forward.1} parent=1 // pred_check
      _
    $region3: #{simple_classifier_forward.1} parent=1 // pred_check_branch
      %19 = sbr.rel (0) target = $region5
    $region4: #{simple_classifier_forward.1} parent=1 // pred_region
      _
    $region5: #{simple_classifier_forward.1} parent=1 // pred_fallthru
      _
    // Predicated region
    $region6: #{simple_classifier_forward.1} parent=1 // pred_check
      _
    $region7: #{simple_classifier_forward.1} parent=1 // pred_check_branch
      %21 = sbr.rel (0) target = $region9
    $region8: #{simple_classifier_forward.1} parent=1 // pred_region
      _
    $region9: #{simple_classifier_forward.1} parent=1 // pred_fallthru
      _
    // Predicated region
    $region10: #{simple_classifier_forward.1} parent=1 // pred_check
      _
    $region11: #{simple_classifier_forward.1} parent=1 // pred_check_branch
      %23 = sbr.rel (0) target = $region13
    $region12: #{simple_classifier_forward.1} parent=1 // pred_region
      _
    $region13: #{simple_classifier_forward.1} parent=1 // pred_fallthru
      _
    // Predicated region
    $region14: #{simple_classifier_forward.1} parent=1 // pred_check
      _
    $region15: #{simple_classifier_forward.1} parent=1 // pred_check_branch
      %25 = sbr.rel (0) target = $region17
    $region16: #{simple_classifier_forward.1} parent=1 // pred_region
      _
    $region17: #{simple_classifier_forward.1} parent=1 // pred_fallthru
      _
    // Predicated region
    $region18: #{simple_classifier_forward.1} parent=1 // pred_check
      _
    $region19: #{simple_classifier_forward.1} parent=1 // pred_check_branch
      %27 = sbr.rel (0) target = $region21
    $region20: #{simple_classifier_forward.1} parent=1 // pred_region
      _
    $region21: #{simple_classifier_forward.1} parent=1 // pred_fallthru
      _
    // Predicated region
    $region22: #{simple_classifier_forward.1} parent=1 // pred_check
      _
    $region23: #{simple_classifier_forward.1} parent=1 // pred_check_branch
      %29 = sbr.rel (0) target = $region25
    $region24: #{simple_classifier_forward.1} parent=1 // pred_region
      _
    $region25: #{simple_classifier_forward.1} parent=1 // pred_fallthru
      _
    // Predicated region
    $region26: #{simple_classifier_forward.1} parent=1 // pred_check
      _
    $region27: #{simple_classifier_forward.1} parent=1 // pred_check_branch
      %31 = sbr.rel (0) target = $region29
    $region28: #{simple_classifier_forward.1} parent=1 // pred_region
      _
    $region29: #{simple_classifier_forward.1} parent=1 // pred_fallthru
      _
    // Predicated region
    $region30: #{simple_classifier_forward.1} parent=1 // pred_check
      _
    $region31: #{simple_classifier_forward.1} parent=1 // pred_check_branch
      %33 = sbr.rel (0) target = $region33
    $region32: #{simple_classifier_forward.1} parent=1 // pred_region
      _
    $region33: #{simple_classifier_forward.1} parent=1 // pred_fallthru
      _
    %v34 = vld [vmem:[%s0] sm:$0xff]
    %v35 = vld [vmem:[%s0 + $0x8] sm:$0xff]
    %v36 = vld [vmem:[%s0 + $0x10] sm:$0xff]
    %v37 = vld [vmem:[%s0 + $0x18] sm:$0xff]
    %v38 = vld [vmem:[%s0 + $0x20] sm:$0xff]
    %v39 = vld [vmem:[%s0 + $0x28] sm:$0xff]
    %v40 = vld [vmem:[%s0 + $0x30] sm:$0xff]
    %v41 = vld [vmem:[%s0 + $0x38] sm:$0xff]
    %v42 = vld [vmem:[%s2] sm:$0xff]
    %v43 = vld [vmem:[%s2 + $0x8] sm:$0xff]
    %v44 = vld [vmem:[%s2 + $0x10] sm:$0xff]
    %v45 = vld [vmem:[%s2 + $0x18] sm:$0xff]
    %v46 = vld [vmem:[%s4] sm:$0x1]
    %v48 = vperm.slane %v46, 0
    %vm50 = vcmask 261120
    %v52 = vsel %vm50, %v34, 0
    %v55 = vsel %vm50, %v35, 0
    %v58 = vsel %vm50, %v36, 0
    %v61 = vsel %vm50, %v37, 0
    %v64 = vsel %vm50, %v38, 0
    %v67 = vsel %vm50, %v39, 0
    %v70 = vsel %vm50, %v40, 0
    %v73 = vsel %vm50, %v41, 0
    %75 = vmatpush.msra.mxu0 0.0
    %76 = vmatpush.msra.mxu0 0.0
    %77 = vmatpush.msra.mxu0 0.0
    %78 = vmatpush.msra.mxu0 0.0
    %79 = vmatpush.msra.mxu0 0.0
    %80 = vmatpush.msra.mxu0 0.0
    %81 = vmatpush.msra.mxu0 0.0
    %82 = vmatpush.msra.mxu0 0.0
    %83 = vmatpush.msra.mxu0 0.0
    %84 = vmatpush.msra.mxu0 0.0
    %85 = vmatpush.msra.mxu0 0.0
    %86 = vmatpush.msra.mxu0 0.0
    %87 = vmatpush.msra.mxu0 %v45
    %88 = vmatpush.msra.mxu0 %v44
    %89 = vmatpush.msra.mxu0 %v43
    %90 = vmatpush.msra.mxu0 %v42
    %91 = vmatmul.f32.gmra.mxu0 %v52
    %v92 = vpop.f32.mrf.mxu0
    %v93 = vadd.f32 %v48, %v92
    %94 = vmatmul.f32.gmra.mxu0 %v55
    %v95 = vpop.f32.mrf.mxu0
    %v96 = vadd.f32 %v48, %v95
    %97 = vmatmul.f32.gmra.mxu0 %v58
    %v98 = vpop.f32.mrf.mxu0
    %v99 = vadd.f32 %v48, %v98
    %100 = vmatmul.f32.gmra.mxu0 %v61
    %v101 = vpop.f32.mrf.mxu0
    %v102 = vadd.f32 %v48, %v101
    %103 = vmatmul.f32.gmra.mxu0 %v64
    %v104 = vpop.f32.mrf.mxu0
    %v105 = vadd.f32 %v48, %v104
    %106 = vmatmul.f32.gmra.mxu0 %v67
    %v107 = vpop.f32.mrf.mxu0
    %v108 = vadd.f32 %v48, %v107
    %109 = vmatmul.f32.gmra.mxu0 %v70
    %v110 = vpop.f32.mrf.mxu0
    %v111 = vadd.f32 %v48, %v110
    %112 = vmatmul.f32.gmra.mxu0 %v73
    %v113 = vpop.f32.mrf.mxu0
    %v114 = vadd.f32 %v48, %v113
    %115 = vdwg.mxu0
    %v116 = vld [vmem:[%s3] sm:$0xff]
    %v117 = vld [vmem:[%s3 + $0x8] sm:$0xff]
    %v118 = vld [vmem:[%s3 + $0x10] sm:$0xff]
    %v119 = vld [vmem:[%s3 + $0x18] sm:$0xff]
    %v120 = vld [vmem:[%s5] sm:$0x1]
    %v121 = vld [vmem:[%s1] sm:$0xff]
    %v123 = vperm.slane %v120, 0
    %v126 = vsel %vm50, %v121, 0
    %128 = vmatpush.msra.mxu0 0.0
    %129 = vmatpush.msra.mxu0 0.0
    %130 = vmatpush.msra.mxu0 0.0
    %131 = vmatpush.msra.mxu0 0.0
    %132 = vmatpush.msra.mxu0 0.0
    %133 = vmatpush.msra.mxu0 0.0
    %134 = vmatpush.msra.mxu0 0.0
    %135 = vmatpush.msra.mxu0 0.0
    %136 = vmatpush.msra.mxu0 0.0
    %137 = vmatpush.msra.mxu0 0.0
    %138 = vmatpush.msra.mxu0 0.0
    %139 = vmatpush.msra.mxu0 0.0
    %140 = vmatpush.msra.mxu0 %v119
    %141 = vmatpush.msra.mxu0 %v118
    %142 = vmatpush.msra.mxu0 %v117
    %143 = vmatpush.msra.mxu0 %v116
    %144 = vmatmul.f32.gmra.mxu0 %v126
    %v145 = vpop.f32.mrf.mxu0
    %v146 = vadd.f32 %v123, %v145
    %147 = vdwg.mxu0
    %v148 = vadd.f32 %v93, %v146
    %v149 = vxor.u32 %v148, 2147483648
    %v150 = vmul.f32 %v149, 1.442695
    %v151 = vpow.pop %v150
    %v152 = vadd.f32 %v151, 1.0
    %v153 = vrcp.pop %v152
    %v154 = vmul.f32 %v152, %v153
    %v155 = vsub.f32 1.0, %v154
    %v156 = vmul.f32 %v153, %v155
    %v157 = vadd.f32 %v153, %v156
    %vm158 = vweird.f32 %v152
    %vm159 = vweird.f32 %v153
    %vm160 = vmor %vm158, %vm159
    %v161 = vsel %vm160, %v153, %v157
    %v162 = vand.u32 2147483647, %v152
    %vm163 = vcmp.eq.f32.partialorder %v162, 8.507059e+37
    %v164 = vand.u32 %v152, 2147483648
    %v165 = vor.u32 1.1754944e-38, %v164
    %v166 = vsel %vm163, %v165, %v161
    %v167 = vmul.f32 1.0, %v166
    %169 = vrot.lane.b32.xlu0 %v146, 64
    %v170 = vpop.permute.xlu0 %169
    %v172 = vmul.f32 %v167, %v170
    %174 = vrot.lane.b32.xlu0 %v172, 64
    %v175 = vpop.permute.xlu0 %174
    %v177 = vadd.f32 %v93, %v175
    %v178 = vtanh.pop %v177
    %v179 = vsub.f32 1.0, %v167
    %181 = vrot.lane.b32.xlu0 %v178, 96
    %v182 = vpop.permute.xlu0 %181
    %v184 = vmul.f32 %v179, %v182
    %185 = vrot.lane.b32.xlu0 %v121, 32
    %v186 = vpop.permute.xlu0 %185
    %v188 = vmul.f32 %v167, %v186
    %v189 = vadd.f32 %v184, %v188
    %191 = vrot.lane.b32.xlu0 %v189, 96
    %v192 = vpop.permute.xlu0 %191
    %194 = vst.msk [vmem:[#allocation2] sm:$0xff] %vm50, %v192
    %v195 = vsel %vm50, %v192, 0
    %197 = vmatpush.msra.mxu0 0.0
    %198 = vmatpush.msra.mxu0 0.0
    %199 = vmatpush.msra.mxu0 0.0
    %200 = vmatpush.msra.mxu0 0.0
    %201 = vmatpush.msra.mxu0 0.0
    %202 = vmatpush.msra.mxu0 0.0
    %203 = vmatpush.msra.mxu0 0.0
    %204 = vmatpush.msra.mxu0 0.0
    %205 = vmatpush.msra.mxu0 0.0
    %206 = vmatpush.msra.mxu0 0.0
    %207 = vmatpush.msra.mxu0 0.0
    %208 = vmatpush.msra.mxu0 0.0
    %209 = vmatpush.msra.mxu0 %v119
    %210 = vmatpush.msra.mxu0 %v118
    %211 = vmatpush.msra.mxu0 %v117
    %212 = vmatpush.msra.mxu0 %v116
    %213 = vmatmul.f32.gmra.mxu0 %v195
    %v214 = vpop.f32.mrf.mxu0
    %v215 = vadd.f32 %v123, %v214
    %216 = vdwg.mxu0
    %v217 = vadd.f32 %v96, %v215
    %v218 = vxor.u32 %v217, 2147483648
    %v219 = vmul.f32 %v218, 1.442695
    %v220 = vpow.pop %v219
    %v221 = vadd.f32 %v220, 1.0
    %v222 = vrcp.pop %v221
    %v223 = vmul.f32 %v221, %v222
    %v224 = vsub.f32 1.0, %v223
    %v225 = vmul.f32 %v222, %v224
    %v226 = vadd.f32 %v222, %v225
    %vm227 = vweird.f32 %v221
    %vm228 = vweird.f32 %v222
    %vm229 = vmor %vm227, %vm228
    %v230 = vsel %vm229, %v222, %v226
    %v231 = vand.u32 2147483647, %v221
    %vm232 = vcmp.eq.f32.partialorder %v231, 8.507059e+37
    %v233 = vand.u32 %v221, 2147483648
    %v234 = vor.u32 1.1754944e-38, %v233
    %v235 = vsel %vm232, %v234, %v230
    %v236 = vmul.f32 1.0, %v235
    %238 = vrot.lane.b32.xlu0 %v215, 64
    %v239 = vpop.permute.xlu0 %238
    %v241 = vmul.f32 %v236, %v239
    %243 = vrot.lane.b32.xlu0 %v241, 64
    %v244 = vpop.permute.xlu0 %243
    %v246 = vadd.f32 %v96, %v244
    %v247 = vtanh.pop %v246
    %v248 = vsub.f32 1.0, %v236
    %250 = vrot.lane.b32.xlu0 %v247, 96
    %v251 = vpop.permute.xlu0 %250
    %v253 = vmul.f32 %v248, %v251
    %v254 = vmul.f32 %v236, %v189
    %v255 = vadd.f32 %v253, %v254
    %257 = vrot.lane.b32.xlu0 %v255, 96
    %v258 = vpop.permute.xlu0 %257
    %260 = vst.msk [vmem:[#allocation2 + $0x8] sm:$0xff] %vm50, %v258
    %v261 = vsel %vm50, %v258, 0
    %263 = vmatpush.msra.mxu0 0.0
    %264 = vmatpush.msra.mxu0 0.0
    %265 = vmatpush.msra.mxu0 0.0
    %266 = vmatpush.msra.mxu0 0.0
    %267 = vmatpush.msra.mxu0 0.0
    %268 = vmatpush.msra.mxu0 0.0
    %269 = vmatpush.msra.mxu0 0.0
    %270 = vmatpush.msra.mxu0 0.0
    %271 = vmatpush.msra.mxu0 0.0
    %272 = vmatpush.msra.mxu0 0.0
    %273 = vmatpush.msra.mxu0 0.0
    %274 = vmatpush.msra.mxu0 0.0
    %275 = vmatpush.msra.mxu0 %v119
    %276 = vmatpush.msra.mxu0 %v118
    %277 = vmatpush.msra.mxu0 %v117
    %278 = vmatpush.msra.mxu0 %v116
    %279 = vmatmul.f32.gmra.mxu0 %v261
    %v280 = vpop.f32.mrf.mxu0
    %v281 = vadd.f32 %v123, %v280
    %282 = vdwg.mxu0
    %v283 = vadd.f32 %v99, %v281
    %v284 = vxor.u32 %v283, 2147483648
    %v285 = vmul.f32 %v284, 1.442695
    %v286 = vpow.pop %v285
    %v287 = vadd.f32 %v286, 1.0
    %v288 = vrcp.pop %v287
    %v289 = vmul.f32 %v287, %v288
    %v290 = vsub.f32 1.0, %v289
    %v291 = vmul.f32 %v288, %v290
    %v292 = vadd.f32 %v288, %v291
    %vm293 = vweird.f32 %v287
    %vm294 = vweird.f32 %v288
    %vm295 = vmor %vm293, %vm294
    %v296 = vsel %vm295, %v288, %v292
    %v297 = vand.u32 2147483647, %v287
    %vm298 = vcmp.eq.f32.partialorder %v297, 8.507059e+37
    %v299 = vand.u32 %v287, 2147483648
    %v300 = vor.u32 1.1754944e-38, %v299
    %v301 = vsel %vm298, %v300, %v296
    %v302 = vmul.f32 1.0, %v301
    %304 = vrot.lane.b32.xlu0 %v281, 64
    %v305 = vpop.permute.xlu0 %304
    %v307 = vmul.f32 %v302, %v305
    %309 = vrot.lane.b32.xlu0 %v307, 64
    %v310 = vpop.permute.xlu0 %309
    %v312 = vadd.f32 %v99, %v310
    %v313 = vtanh.pop %v312
    %v314 = vsub.f32 1.0, %v302
    %316 = vrot.lane.b32.xlu0 %v313, 96
    %v317 = vpop.permute.xlu0 %316
    %v319 = vmul.f32 %v314, %v317
    %v320 = vmul.f32 %v302, %v255
    %v321 = vadd.f32 %v319, %v320
    %323 = vrot.lane.b32.xlu0 %v321, 96
    %v324 = vpop.permute.xlu0 %323
    %326 = vst.msk [vmem:[#allocation2 + $0x10] sm:$0xff] %vm50, %v324
    %v327 = vsel %vm50, %v324, 0
    %329 = vmatpush.msra.mxu0 0.0
    %330 = vmatpush.msra.mxu0 0.0
    %331 = vmatpush.msra.mxu0 0.0
    %332 = vmatpush.msra.mxu0 0.0
    %333 = vmatpush.msra.mxu0 0.0
    %334 = vmatpush.msra.mxu0 0.0
    %335 = vmatpush.msra.mxu0 0.0
    %336 = vmatpush.msra.mxu0 0.0
    %337 = vmatpush.msra.mxu0 0.0
    %338 = vmatpush.msra.mxu0 0.0
    %339 = vmatpush.msra.mxu0 0.0
    %340 = vmatpush.msra.mxu0 0.0
    %341 = vmatpush.msra.mxu0 %v119
    %342 = vmatpush.msra.mxu0 %v118
    %343 = vmatpush.msra.mxu0 %v117
    %344 = vmatpush.msra.mxu0 %v116
    %345 = vmatmul.f32.gmra.mxu0 %v327
    %v346 = vpop.f32.mrf.mxu0
    %v347 = vadd.f32 %v123, %v346
    %348 = vdwg.mxu0
    %v349 = vadd.f32 %v102, %v347
    %v350 = vxor.u32 %v349, 2147483648
    %v351 = vmul.f32 %v350, 1.442695
    %v352 = vpow.pop %v351
    %v353 = vadd.f32 %v352, 1.0
    %v354 = vrcp.pop %v353
    %v355 = vmul.f32 %v353, %v354
    %v356 = vsub.f32 1.0, %v355
    %v357 = vmul.f32 %v354, %v356
    %v358 = vadd.f32 %v354, %v357
    %vm359 = vweird.f32 %v353
    %vm360 = vweird.f32 %v354
    %vm361 = vmor %vm359, %vm360
    %v362 = vsel %vm361, %v354, %v358
    %v363 = vand.u32 2147483647, %v353
    %vm364 = vcmp.eq.f32.partialorder %v363, 8.507059e+37
    %v365 = vand.u32 %v353, 2147483648
    %v366 = vor.u32 1.1754944e-38, %v365
    %v367 = vsel %vm364, %v366, %v362
    %v368 = vmul.f32 1.0, %v367
    %370 = vrot.lane.b32.xlu0 %v347, 64
    %v371 = vpop.permute.xlu0 %370
    %v373 = vmul.f32 %v368, %v371
    %375 = vrot.lane.b32.xlu0 %v373, 64
    %v376 = vpop.permute.xlu0 %375
    %v378 = vadd.f32 %v102, %v376
    %v379 = vtanh.pop %v378
    %v380 = vsub.f32 1.0, %v368
    %382 = vrot.lane.b32.xlu0 %v379, 96
    %v383 = vpop.permute.xlu0 %382
    %v385 = vmul.f32 %v380, %v383
    %v386 = vmul.f32 %v368, %v321
    %v387 = vadd.f32 %v385, %v386
    %389 = vrot.lane.b32.xlu0 %v387, 96
    %v390 = vpop.permute.xlu0 %389
    %392 = vst.msk [vmem:[#allocation2 + $0x18] sm:$0xff] %vm50, %v390
    %v393 = vsel %vm50, %v390, 0
    %395 = vmatpush.msra.mxu0 0.0
    %396 = vmatpush.msra.mxu0 0.0
    %397 = vmatpush.msra.mxu0 0.0
    %398 = vmatpush.msra.mxu0 0.0
    %399 = vmatpush.msra.mxu0 0.0
    %400 = vmatpush.msra.mxu0 0.0
    %401 = vmatpush.msra.mxu0 0.0
    %402 = vmatpush.msra.mxu0 0.0
    %403 = vmatpush.msra.mxu0 0.0
    %404 = vmatpush.msra.mxu0 0.0
    %405 = vmatpush.msra.mxu0 0.0
    %406 = vmatpush.msra.mxu0 0.0
    %407 = vmatpush.msra.mxu0 %v119
    %408 = vmatpush.msra.mxu0 %v118
    %409 = vmatpush.msra.mxu0 %v117
    %410 = vmatpush.msra.mxu0 %v116
    %411 = vmatmul.f32.gmra.mxu0 %v393
    %v412 = vpop.f32.mrf.mxu0
    %v413 = vadd.f32 %v123, %v412
    %414 = vdwg.mxu0
    %v415 = vadd.f32 %v105, %v413
    %v416 = vxor.u32 %v415, 2147483648
    %v417 = vmul.f32 %v416, 1.442695
    %v418 = vpow.pop %v417
    %v419 = vadd.f32 %v418, 1.0
    %v420 = vrcp.pop %v419
    %v421 = vmul.f32 %v419, %v420
    %v422 = vsub.f32 1.0, %v421
    %v423 = vmul.f32 %v420, %v422
    %v424 = vadd.f32 %v420, %v423
    %vm425 = vweird.f32 %v419
    %vm426 = vweird.f32 %v420
    %vm427 = vmor %vm425, %vm426
    %v428 = vsel %vm427, %v420, %v424
    %v429 = vand.u32 2147483647, %v419
    %vm430 = vcmp.eq.f32.partialorder %v429, 8.507059e+37
    %v431 = vand.u32 %v419, 2147483648
    %v432 = vor.u32 1.1754944e-38, %v431
    %v433 = vsel %vm430, %v432, %v428
    %v434 = vmul.f32 1.0, %v433
    %436 = vrot.lane.b32.xlu0 %v413, 64
    %v437 = vpop.permute.xlu0 %436
    %v439 = vmul.f32 %v434, %v437
    %441 = vrot.lane.b32.xlu0 %v439, 64
    %v442 = vpop.permute.xlu0 %441
    %v444 = vadd.f32 %v105, %v442
    %v445 = vtanh.pop %v444
    %v446 = vsub.f32 1.0, %v434
    %448 = vrot.lane.b32.xlu0 %v445, 96
    %v449 = vpop.permute.xlu0 %448
    %v451 = vmul.f32 %v446, %v449
    %v452 = vmul.f32 %v434, %v387
    %v453 = vadd.f32 %v451, %v452
    %455 = vrot.lane.b32.xlu0 %v453, 96
    %v456 = vpop.permute.xlu0 %455
    %458 = vst.msk [vmem:[#allocation2 + $0x20] sm:$0xff] %vm50, %v456
    %v459 = vsel %vm50, %v456, 0
    %461 = vmatpush.msra.mxu0 0.0
    %462 = vmatpush.msra.mxu0 0.0
    %463 = vmatpush.msra.mxu0 0.0
    %464 = vmatpush.msra.mxu0 0.0
    %465 = vmatpush.msra.mxu0 0.0
    %466 = vmatpush.msra.mxu0 0.0
    %467 = vmatpush.msra.mxu0 0.0
    %468 = vmatpush.msra.mxu0 0.0
    %469 = vmatpush.msra.mxu0 0.0
    %470 = vmatpush.msra.mxu0 0.0
    %471 = vmatpush.msra.mxu0 0.0
    %472 = vmatpush.msra.mxu0 0.0
    %473 = vmatpush.msra.mxu0 %v119
    %474 = vmatpush.msra.mxu0 %v118
    %475 = vmatpush.msra.mxu0 %v117
    %476 = vmatpush.msra.mxu0 %v116
    %477 = vmatmul.f32.gmra.mxu0 %v459
    %v478 = vpop.f32.mrf.mxu0
    %v479 = vadd.f32 %v123, %v478
    %480 = vdwg.mxu0
    %v481 = vadd.f32 %v108, %v479
    %v482 = vxor.u32 %v481, 2147483648
    %v483 = vmul.f32 %v482, 1.442695
    %v484 = vpow.pop %v483
    %v485 = vadd.f32 %v484, 1.0
    %v486 = vrcp.pop %v485
    %v487 = vmul.f32 %v485, %v486
    %v488 = vsub.f32 1.0, %v487
    %v489 = vmul.f32 %v486, %v488
    %v490 = vadd.f32 %v486, %v489
    %vm491 = vweird.f32 %v485
    %vm492 = vweird.f32 %v486
    %vm493 = vmor %vm491, %vm492
    %v494 = vsel %vm493, %v486, %v490
    %v495 = vand.u32 2147483647, %v485
    %vm496 = vcmp.eq.f32.partialorder %v495, 8.507059e+37
    %v497 = vand.u32 %v485, 2147483648
    %v498 = vor.u32 1.1754944e-38, %v497
    %v499 = vsel %vm496, %v498, %v494
    %v500 = vmul.f32 1.0, %v499
    %502 = vrot.lane.b32.xlu0 %v479, 64
    %v503 = vpop.permute.xlu0 %502
    %v505 = vmul.f32 %v500, %v503
    %507 = vrot.lane.b32.xlu0 %v505, 64
    %v508 = vpop.permute.xlu0 %507
    %v510 = vadd.f32 %v108, %v508
    %v511 = vtanh.pop %v510
    %v512 = vsub.f32 1.0, %v500
    %514 = vrot.lane.b32.xlu0 %v511, 96
    %v515 = vpop.permute.xlu0 %514
    %v517 = vmul.f32 %v512, %v515
    %v518 = vmul.f32 %v500, %v453
    %v519 = vadd.f32 %v517, %v518
    %521 = vrot.lane.b32.xlu0 %v519, 96
    %v522 = vpop.permute.xlu0 %521
    %524 = vst.msk [vmem:[#allocation2 + $0x28] sm:$0xff] %vm50, %v522
    %v525 = vsel %vm50, %v522, 0
    %527 = vmatpush.msra.mxu0 0.0
    %528 = vmatpush.msra.mxu0 0.0
    %529 = vmatpush.msra.mxu0 0.0
    %530 = vmatpush.msra.mxu0 0.0
    %531 = vmatpush.msra.mxu0 0.0
    %532 = vmatpush.msra.mxu0 0.0
    %533 = vmatpush.msra.mxu0 0.0
    %534 = vmatpush.msra.mxu0 0.0
    %535 = vmatpush.msra.mxu0 0.0
    %536 = vmatpush.msra.mxu0 0.0
    %537 = vmatpush.msra.mxu0 0.0
    %538 = vmatpush.msra.mxu0 0.0
    %539 = vmatpush.msra.mxu0 %v119
    %540 = vmatpush.msra.mxu0 %v118
    %541 = vmatpush.msra.mxu0 %v117
    %542 = vmatpush.msra.mxu0 %v116
    %543 = vmatmul.f32.gmra.mxu0 %v525
    %v544 = vpop.f32.mrf.mxu0
    %v545 = vadd.f32 %v123, %v544
    %546 = vdwg.mxu0
    %v547 = vadd.f32 %v111, %v545
    %v548 = vxor.u32 %v547, 2147483648
    %v549 = vmul.f32 %v548, 1.442695
    %v550 = vpow.pop %v549
    %v551 = vadd.f32 %v550, 1.0
    %v552 = vrcp.pop %v551
    %v553 = vmul.f32 %v551, %v552
    %v554 = vsub.f32 1.0, %v553
    %v555 = vmul.f32 %v552, %v554
    %v556 = vadd.f32 %v552, %v555
    %vm557 = vweird.f32 %v551
    %vm558 = vweird.f32 %v552
    %vm559 = vmor %vm557, %vm558
    %v560 = vsel %vm559, %v552, %v556
    %v561 = vand.u32 2147483647, %v551
    %vm562 = vcmp.eq.f32.partialorder %v561, 8.507059e+37
    %v563 = vand.u32 %v551, 2147483648
    %v564 = vor.u32 1.1754944e-38, %v563
    %v565 = vsel %vm562, %v564, %v560
    %v566 = vmul.f32 1.0, %v565
    %568 = vrot.lane.b32.xlu0 %v545, 64
    %v569 = vpop.permute.xlu0 %568
    %v571 = vmul.f32 %v566, %v569
    %573 = vrot.lane.b32.xlu0 %v571, 64
    %v574 = vpop.permute.xlu0 %573
    %v576 = vadd.f32 %v111, %v574
    %v577 = vtanh.pop %v576
    %v578 = vsub.f32 1.0, %v566
    %580 = vrot.lane.b32.xlu0 %v577, 96
    %v581 = vpop.permute.xlu0 %580
    %v583 = vmul.f32 %v578, %v581
    %v584 = vmul.f32 %v566, %v519
    %v585 = vadd.f32 %v583, %v584
    %587 = vrot.lane.b32.xlu0 %v585, 96
    %v588 = vpop.permute.xlu0 %587
    %590 = vst.msk [vmem:[#allocation2 + $0x30] sm:$0xff] %vm50, %v588
    %v591 = vsel %vm50, %v588, 0
    %593 = vmatpush.msra.mxu0 0.0
    %594 = vmatpush.msra.mxu0 0.0
    %595 = vmatpush.msra.mxu0 0.0
    %596 = vmatpush.msra.mxu0 0.0
    %597 = vmatpush.msra.mxu0 0.0
    %598 = vmatpush.msra.mxu0 0.0
    %599 = vmatpush.msra.mxu0 0.0
    %600 = vmatpush.msra.mxu0 0.0
    %601 = vmatpush.msra.mxu0 0.0
    %602 = vmatpush.msra.mxu0 0.0
    %603 = vmatpush.msra.mxu0 0.0
    %604 = vmatpush.msra.mxu0 0.0
    %605 = vmatpush.msra.mxu0 %v119
    %606 = vmatpush.msra.mxu0 %v118
    %607 = vmatpush.msra.mxu0 %v117
    %608 = vmatpush.msra.mxu0 %v116
    %609 = vmatmul.f32.gmra.mxu0 %v591
    %v610 = vpop.f32.mrf.mxu0
    %v611 = vadd.f32 %v123, %v610
    %612 = vdwg.mxu0
    %v613 = vadd.f32 %v114, %v611
    %v614 = vxor.u32 %v613, 2147483648
    %v615 = vmul.f32 %v614, 1.442695
    %v616 = vpow.pop %v615
    %v617 = vadd.f32 %v616, 1.0
    %v618 = vrcp.pop %v617
    %v619 = vmul.f32 %v617, %v618
    %v620 = vsub.f32 1.0, %v619
    %v621 = vmul.f32 %v618, %v620
    %v622 = vadd.f32 %v618, %v621
    %vm623 = vweird.f32 %v617
    %vm624 = vweird.f32 %v618
    %vm625 = vmor %vm623, %vm624
    %v626 = vsel %vm625, %v618, %v622
    %v627 = vand.u32 2147483647, %v617
    %vm628 = vcmp.eq.f32.partialorder %v627, 8.507059e+37
    %v629 = vand.u32 %v617, 2147483648
    %v630 = vor.u32 1.1754944e-38, %v629
    %v631 = vsel %vm628, %v630, %v626
    %v632 = vmul.f32 1.0, %v631
    %634 = vrot.lane.b32.xlu0 %v611, 64
    %v635 = vpop.permute.xlu0 %634
    %v637 = vmul.f32 %v632, %v635
    %639 = vrot.lane.b32.xlu0 %v637, 64
    %v640 = vpop.permute.xlu0 %639
    %v642 = vadd.f32 %v114, %v640
    %v643 = vtanh.pop %v642
    %v644 = vsub.f32 1.0, %v632
    %646 = vrot.lane.b32.xlu0 %v643, 96
    %v647 = vpop.permute.xlu0 %646
    %v649 = vmul.f32 %v644, %v647
    %v650 = vmul.f32 %v632, %v585
    %v651 = vadd.f32 %v649, %v650
    %653 = vrot.lane.b32.xlu0 %v651, 96
    %v654 = vpop.permute.xlu0 %653
    %656 = vst.msk [vmem:[#allocation2 + $0x38] sm:$0xff] %vm50, %v654
    %657 = vst.msk [vmem:[#allocation4] sm:$0xff] %vm50, %v654
    %v658 = vld [vmem:[#allocation2] sm:$0xff]
    %v659 = vld [vmem:[#allocation2 + $0x8] sm:$0xff]
    %v660 = vld [vmem:[#allocation2 + $0x10] sm:$0xff]
    %v661 = vld [vmem:[#allocation2 + $0x18] sm:$0xff]
    %v662 = vld [vmem:[#allocation2 + $0x20] sm:$0xff]
    %v663 = vld [vmem:[#allocation2 + $0x28] sm:$0xff]
    %v664 = vld [vmem:[#allocation2 + $0x30] sm:$0xff]
    %v665 = vld [vmem:[#allocation2 + $0x38] sm:$0xff]
    %v666 = vmax.f32 %v658, 0.0
    %v667 = vmax.f32 %v659, 0.0
    %v668 = vmax.f32 %v660, 0.0
    %v669 = vmax.f32 %v661, 0.0
    %v670 = vmax.f32 %v662, 0.0
    %v671 = vmax.f32 %v663, 0.0
    %v672 = vmax.f32 %v664, 0.0
    %v673 = vmax.f32 %v665, 0.0
    %v674 = vld [vmem:[%s6] sm:$0x1]
    %v676 = vperm.slane %v674, 0
    %v678 = vmul.f32 %v666, %v676
    %v679 = vmul.f32 %v667, %v676
    %v680 = vmul.f32 %v668, %v676
    %v681 = vmul.f32 %v669, %v676
    %v682 = vmul.f32 %v670, %v676
    %v683 = vmul.f32 %v671, %v676
    %v684 = vmul.f32 %v672, %v676
    %v685 = vmul.f32 %v673, %v676
    %v686 = vsel %vm50, %v678, 0.0
    %687 = vadd.xlane.f32.xlu0 %v686
    %v688 = vpop.xlane.xlu0 %687
    %v689 = vsel %vm50, %v679, 0.0
    %690 = vadd.xlane.f32.xlu0 %v689
    %v691 = vpop.xlane.xlu0 %690
    %v692 = vsel %vm50, %v680, 0.0
    %693 = vadd.xlane.f32.xlu0 %v692
    %v694 = vpop.xlane.xlu0 %693
    %v695 = vsel %vm50, %v681, 0.0
    %696 = vadd.xlane.f32.xlu0 %v695
    %v697 = vpop.xlane.xlu0 %696
    %v698 = vsel %vm50, %v682, 0.0
    %699 = vadd.xlane.f32.xlu0 %v698
    %v700 = vpop.xlane.xlu0 %699
    %v701 = vsel %vm50, %v683, 0.0
    %702 = vadd.xlane.f32.xlu0 %v701
    %v703 = vpop.xlane.xlu0 %702
    %v704 = vsel %vm50, %v684, 0.0
    %705 = vadd.xlane.f32.xlu0 %v704
    %v706 = vpop.xlane.xlu0 %705
    %v707 = vsel %vm50, %v685, 0.0
    %708 = vadd.xlane.f32.xlu0 %v707
    %v709 = vpop.xlane.xlu0 %708
    %v710 = vld [vmem:[#allocation3] sm:$0x1]
    %v712 = vperm.slane %v710, 0
    %v714 = vadd.f32 %v688, %v712
    %v715 = vadd.f32 %v691, %v712
    %v716 = vadd.f32 %v694, %v712
    %v717 = vadd.f32 %v697, %v712
    %v718 = vadd.f32 %v700, %v712
    %v719 = vadd.f32 %v703, %v712
    %v720 = vadd.f32 %v706, %v712
    %v721 = vadd.f32 %v709, %v712
    %v722 = vxor.u32 %v714, 2147483648
    %v723 = vxor.u32 %v715, 2147483648
    %v724 = vxor.u32 %v716, 2147483648
    %v725 = vxor.u32 %v717, 2147483648
    %v726 = vxor.u32 %v718, 2147483648
    %v727 = vxor.u32 %v719, 2147483648
    %v728 = vxor.u32 %v720, 2147483648
    %v729 = vxor.u32 %v721, 2147483648
    %v730 = vmul.f32 %v722, 1.442695
    %v731 = vpow.pop %v730
    %v732 = vmul.f32 %v723, 1.442695
    %v733 = vpow.pop %v732
    %v734 = vmul.f32 %v724, 1.442695
    %v735 = vpow.pop %v734
    %v736 = vmul.f32 %v725, 1.442695
    %v737 = vpow.pop %v736
    %v738 = vmul.f32 %v726, 1.442695
    %v739 = vpow.pop %v738
    %v740 = vmul.f32 %v727, 1.442695
    %v741 = vpow.pop %v740
    %v742 = vmul.f32 %v728, 1.442695
    %v743 = vpow.pop %v742
    %v744 = vmul.f32 %v729, 1.442695
    %v745 = vpow.pop %v744
    %v746 = vadd.f32 %v731, 1.0
    %v747 = vadd.f32 %v733, 1.0
    %v748 = vadd.f32 %v735, 1.0
    %v749 = vadd.f32 %v737, 1.0
    %v750 = vadd.f32 %v739, 1.0
    %v751 = vadd.f32 %v741, 1.0
    %v752 = vadd.f32 %v743, 1.0
    %v753 = vadd.f32 %v745, 1.0
    %v754 = vrcp.pop %v746
    %v755 = vmul.f32 %v746, %v754
    %v756 = vsub.f32 1.0, %v755
    %v757 = vmul.f32 %v754, %v756
    %v758 = vadd.f32 %v754, %v757
    %vm759 = vweird.f32 %v746
    %vm760 = vweird.f32 %v754
    %vm761 = vmor %vm759, %vm760
    %v762 = vsel %vm761, %v754, %v758
    %v763 = vand.u32 2147483647, %v746
    %vm764 = vcmp.eq.f32.partialorder %v763, 8.507059e+37
    %v765 = vand.u32 %v746, 2147483648
    %v766 = vor.u32 1.1754944e-38, %v765
    %v767 = vsel %vm764, %v766, %v762
    %v768 = vmul.f32 1.0, %v767
    %v769 = vrcp.pop %v747
    %v770 = vmul.f32 %v747, %v769
    %v771 = vsub.f32 1.0, %v770
    %v772 = vmul.f32 %v769, %v771
    %v773 = vadd.f32 %v769, %v772
    %vm774 = vweird.f32 %v747
    %vm775 = vweird.f32 %v769
    %vm776 = vmor %vm774, %vm775
    %v777 = vsel %vm776, %v769, %v773
    %v778 = vand.u32 2147483647, %v747
    %vm779 = vcmp.eq.f32.partialorder %v778, 8.507059e+37
    %v780 = vand.u32 %v747, 2147483648
    %v781 = vor.u32 1.1754944e-38, %v780
    %v782 = vsel %vm779, %v781, %v777
    %v783 = vmul.f32 1.0, %v782
    %v784 = vrcp.pop %v748
    %v785 = vmul.f32 %v748, %v784
    %v786 = vsub.f32 1.0, %v785
    %v787 = vmul.f32 %v784, %v786
    %v788 = vadd.f32 %v784, %v787
    %vm789 = vweird.f32 %v748
    %vm790 = vweird.f32 %v784
    %vm791 = vmor %vm789, %vm790
    %v792 = vsel %vm791, %v784, %v788
    %v793 = vand.u32 2147483647, %v748
    %vm794 = vcmp.eq.f32.partialorder %v793, 8.507059e+37
    %v795 = vand.u32 %v748, 2147483648
    %v796 = vor.u32 1.1754944e-38, %v795
    %v797 = vsel %vm794, %v796, %v792
    %v798 = vmul.f32 1.0, %v797
    %v799 = vrcp.pop %v749
    %v800 = vmul.f32 %v749, %v799
    %v801 = vsub.f32 1.0, %v800
    %v802 = vmul.f32 %v799, %v801
    %v803 = vadd.f32 %v799, %v802
    %vm804 = vweird.f32 %v749
    %vm805 = vweird.f32 %v799
    %vm806 = vmor %vm804, %vm805
    %v807 = vsel %vm806, %v799, %v803
    %v808 = vand.u32 2147483647, %v749
    %vm809 = vcmp.eq.f32.partialorder %v808, 8.507059e+37
    %v810 = vand.u32 %v749, 2147483648
    %v811 = vor.u32 1.1754944e-38, %v810
    %v812 = vsel %vm809, %v811, %v807
    %v813 = vmul.f32 1.0, %v812
    %v814 = vrcp.pop %v750
    %v815 = vmul.f32 %v750, %v814
    %v816 = vsub.f32 1.0, %v815
    %v817 = vmul.f32 %v814, %v816
    %v818 = vadd.f32 %v814, %v817
    %vm819 = vweird.f32 %v750
    %vm820 = vweird.f32 %v814
    %vm821 = vmor %vm819, %vm820
    %v822 = vsel %vm821, %v814, %v818
    %v823 = vand.u32 2147483647, %v750
    %vm824 = vcmp.eq.f32.partialorder %v823, 8.507059e+37
    %v825 = vand.u32 %v750, 2147483648
    %v826 = vor.u32 1.1754944e-38, %v825
    %v827 = vsel %vm824, %v826, %v822
    %v828 = vmul.f32 1.0, %v827
    %v829 = vrcp.pop %v751
    %v830 = vmul.f32 %v751, %v829
    %v831 = vsub.f32 1.0, %v830
    %v832 = vmul.f32 %v829, %v831
    %v833 = vadd.f32 %v829, %v832
    %vm834 = vweird.f32 %v751
    %vm835 = vweird.f32 %v829
    %vm836 = vmor %vm834, %vm835
    %v837 = vsel %vm836, %v829, %v833
    %v838 = vand.u32 2147483647, %v751
    %vm839 = vcmp.eq.f32.partialorder %v838, 8.507059e+37
    %v840 = vand.u32 %v751, 2147483648
    %v841 = vor.u32 1.1754944e-38, %v840
    %v842 = vsel %vm839, %v841, %v837
    %v843 = vmul.f32 1.0, %v842
    %v844 = vrcp.pop %v752
    %v845 = vmul.f32 %v752, %v844
    %v846 = vsub.f32 1.0, %v845
    %v847 = vmul.f32 %v844, %v846
    %v848 = vadd.f32 %v844, %v847
    %vm849 = vweird.f32 %v752
    %vm850 = vweird.f32 %v844
    %vm851 = vmor %vm849, %vm850
    %v852 = vsel %vm851, %v844, %v848
    %v853 = vand.u32 2147483647, %v752
    %vm854 = vcmp.eq.f32.partialorder %v853, 8.507059e+37
    %v855 = vand.u32 %v752, 2147483648
    %v856 = vor.u32 1.1754944e-38, %v855
    %v857 = vsel %vm854, %v856, %v852
    %v858 = vmul.f32 1.0, %v857
    %v859 = vrcp.pop %v753
    %v860 = vmul.f32 %v753, %v859
    %v861 = vsub.f32 1.0, %v860
    %v862 = vmul.f32 %v859, %v861
    %v863 = vadd.f32 %v859, %v862
    %vm864 = vweird.f32 %v753
    %vm865 = vweird.f32 %v859
    %vm866 = vmor %vm864, %vm865
    %v867 = vsel %vm866, %v859, %v863
    %v868 = vand.u32 2147483647, %v753
    %vm869 = vcmp.eq.f32.partialorder %v868, 8.507059e+37
    %v870 = vand.u32 %v753, 2147483648
    %v871 = vor.u32 1.1754944e-38, %v870
    %v872 = vsel %vm869, %v871, %v867
    %v873 = vmul.f32 1.0, %v872
    %vm874 = vcmask 7168
    %875 = vst.msk [vmem:[%s8] sm:$0xff] %vm874, %v768
    %876 = vst.msk [vmem:[%s8 + $0x8] sm:$0xff] %vm874, %v783
    %877 = vst.msk [vmem:[%s8 + $0x10] sm:$0xff] %vm874, %v798
    %878 = vst.msk [vmem:[%s8 + $0x18] sm:$0xff] %vm874, %v813
    %879 = vst.msk [vmem:[%s8 + $0x20] sm:$0xff] %vm874, %v828
    %880 = vst.msk [vmem:[%s8 + $0x28] sm:$0xff] %vm874, %v843
    %881 = vst.msk [vmem:[%s8 + $0x30] sm:$0xff] %vm874, %v858
    %882 = vst.msk [vmem:[%s8 + $0x38] sm:$0xff] %vm874, %v873
    // Predicated region
    $region34: #{simple_classifier_forward.1} parent=1 // pred_check
      _
    $region35: #{simple_classifier_forward.1} parent=1 // pred_check_branch
      %884 = sbr.rel (0) target = $region37
    $region36: #{simple_classifier_forward.1} parent=1 // pred_region
      _
    $region37: #{simple_classifier_forward.1} parent=1 // pred_fallthru
      _
    // Predicated region
    $region38: #{simple_classifier_forward.1} parent=1 // pred_check
      _
    $region39: #{simple_classifier_forward.1} parent=1 // pred_check_branch
      %886 = sbr.rel (0) target = $region41
    $region40: #{simple_classifier_forward.1} parent=1 // pred_region
      %888 = vsyncadd [#allocation5], 0
      %s890 = sshll.u32 [#allocation4], 4
      %s891 = int_to_ptr.vmem [resolvable:$true] %s890
      %s892 = sshll.u32 %s9, 4
      %s893 = int_to_ptr.hbm [resolvable:$true] %s892
      %895 = dma.vmem_to_hbm [thread:$0]  %s891, 128, %s893, [#allocation5]
    $region41: #{simple_classifier_forward.1} parent=1 // pred_fallthru
      _
    // Predicated region
    $region42: #{simple_classifier_forward.1} parent=1 // pred_check
      _
    $region43: #{simple_classifier_forward.1} parent=1 // pred_check_branch
      %897 = sbr.rel (0) target = $region45
    $region44: #{simple_classifier_forward.1} parent=1 // pred_region
      _
    $region45: #{simple_classifier_forward.1} parent=1 // pred_fallthru
      _
    // Predicated region
    $region46: #{simple_classifier_forward.1} parent=1 // pred_check
      _
    $region47: #{simple_classifier_forward.1} parent=1 // pred_check_branch
      %899 = sbr.rel (0) target = $region49
    $region48: #{simple_classifier_forward.1} parent=1 // pred_region
      %901 = dma.done [#allocation5], 128
    $region49: #{simple_classifier_forward.1} parent=1 // pred_fallthru
      _
    %902 = vsyncpa [#allocation5], 1

</llo_original>
